<compile_context>
chip_gen: v7x
topology: tpu7x:2x2x1
jax: 0.10.0
libtpu: 0.0.40
codegen_flags: <defaults>
</compile_context>

<pallas_src>
import jax
import jax.numpy as jnp
from jax.experimental import pallas as pl
from jax.experimental.pallas import tpu as pltpu


def _upsample_conv_kernel(win_ref, w_ref, bias_ref, o_ref):
    """Fused nearest-2x upsample + 3x3 'same' conv (phase decomposed).

    win_ref  : (T, H, L)  shifted windows of the zero-padded ORIGINAL input.
                          Row t = (tap(a,b), ci); lane = (batch, phase, co, j);
                          value = xpad[batch, ci, i + dy + a, j + dx + b]
                          (replicated over co).
    w_ref    : (T, H, L)  effective 2x2-tap weights w_eff[dy,dx,a,b,ci,co],
                          pre-broadcast over (H, batch, j).
    bias_ref : (H, L)     bias[co], pre-broadcast over (H, batch, phase, j).
    o_ref    : (H, L)     phase/batch/channel-packed output rows.
    """
    T = win_ref.shape[0]
    acc = bias_ref[...]                       # (H, L) f32
    # T = 16 unrolled full-vreg MACs; live set per tap is tiny (acc + one
    # window slab + one weight slab), so no spill pressure.
    for t in range(T):
        acc = acc + win_ref[t] * w_ref[t]
    o_ref[...] = acc.astype(o_ref.dtype)


def upsample_block(x, w_oihw, bias):
    """Forward pass of UpSampleBlock.

    x      : (B, C, H, W)  float32, NCHW
    w_oihw : (C, C, 3, 3)  float32  (PyTorch Conv2d weight layout: OIHW)
    bias   : (C,)          float32
    returns (B, C, 2H, 2W) float32
    """
    B, C, H, W = x.shape
    f32 = jnp.float32
    T = 4 * C                 # (2x2 tap) x input channel rows
    L = B * 4 * C * W         # (batch, phase, out-channel, col) lanes

    # Lane-dense / sublane-aligned layout (perf guarantee, not correctness).
    assert L % 128 == 0 and H % 8 == 0, (L, H)

    # ---- fold the nearest-2x upsample into the conv weights (phase decomp) --
    # y[b,co,2i+dy,2j+dx] = bias[co]
    #   + sum_{a,bb,ci} w_eff[dy,dx,a,bb,ci,co] * xpad[b, ci, i+dy+a, j+dx+bb]
    R = jnp.array([[[1., 0., 0.],
                    [0., 1., 1.]],
                   [[1., 1., 0.],
                    [0., 0., 1.]]], dtype=f32)                    # [dy, a, ky]
    w_eff = jnp.einsum('yah,xbw,oihw->yxabio', R, R,
                       w_oihw.astype(f32))                        # (dy,dx,a,b,ci,co)

    # pack weights: row t = (a*2+b)*C + ci ; lane = ((batch*4 + p)*C + co)*W + j
    wp = w_eff.transpose(2, 3, 4, 0, 1, 5).reshape(T, 4 * C)      # (t, p*C+co)
    wp = jnp.broadcast_to(wp[:, None, None, :, None],
                          (T, H, B, 4 * C, W)).reshape(T, H, L)

    # pack bias over the same lane layout, pre-broadcast over sublanes
    bp = jnp.broadcast_to(bias.astype(f32)[None, None, None, :, None],
                          (H, B, 4, C, W)).reshape(H, L)

    # pack shifted windows of the zero-padded ORIGINAL input (the upsampled
    # intermediate never exists)
    xpad = jnp.pad(x.astype(f32), ((0, 0), (0, 0), (1, 1), (1, 1)))
    taps = []
    for a in range(2):
        for b in range(2):
            phases = [xpad[:, :, dy + a:dy + a + H, dx + b:dx + b + W]
                      for dy in range(2) for dx in range(2)]
            taps.append(jnp.stack(phases, axis=2))                # (B, C, 4, H, W)
    win = jnp.stack(taps, axis=0)                                 # (tap, B, C, p, H, W)
    win = win.transpose(0, 2, 4, 1, 3, 5)                         # (tap, ci, i, b, p, j)
    win = jnp.broadcast_to(win[:, :, :, :, :, None, :],
                           (4, C, H, B, 4, C, W)).reshape(T, H, L)

    flops = 2 * T * H * L
    bytes_accessed = 4 * (2 * T * H * L + 2 * H * L)

    out = pl.pallas_call(
        _upsample_conv_kernel,
        out_shape=jax.ShapeDtypeStruct((H, L), f32),
        grid_spec=pl.GridSpec(
            grid=(1,),                                            # single step
            in_specs=[
                pl.BlockSpec((T, H, L), lambda i: (0, 0, 0)),
                pl.BlockSpec((T, H, L), lambda i: (0, 0, 0)),
                pl.BlockSpec((H, L), lambda i: (0, 0)),
            ],
            out_specs=pl.BlockSpec((H, L), lambda i: (0, 0)),
        ),
        compiler_params=pltpu.CompilerParams(
            dimension_semantics=("arbitrary",),
        ),
        cost_estimate=pl.CostEstimate(flops=flops, transcendentals=0,
                                      bytes_accessed=bytes_accessed),
    )(win, wp, bp)

    # de-interleave: (H, (b, dy, dx, co, j)) -> (B, C, 2H, 2W)
    out = out.reshape(H, B, 2, 2, C, W)          # (i, b, dy, dx, co, j)
    out = out.transpose(1, 4, 0, 2, 5, 3)        # (b, co, i, dy, j, dx)
    return out.reshape(B, C, 2 * H, 2 * W)

    # TODO(synk): for production channel counts, switch the MAC loop to a
    # single MXU matmul (im2col (B*H*W, 9*C) x (9*C, 4*C) packed weights).


if __name__ == "__main__":
    B, C, H, W = 2, 4, 16, 16

    key = jax.random.PRNGKey(0)
    kx, kw, kb = jax.random.split(key, 3)

    x = jax.random.normal(kx, (B, C, H, W), dtype=jnp.float32)
    # deterministic synthetic Conv2d(C, C, 3) parameters (OIHW weight, bias)
    w = jax.random.normal(kw, (C, C, 3, 3), dtype=jnp.float32) * (1.0 / (C * 9) ** 0.5)
    b = jax.random.normal(kb, (C,), dtype=jnp.float32) * 0.1

    out = jax.block_until_ready(upsample_block(x, w, b))

    # pure-JAX reference for validation (nearest 2x upsample then 3x3 conv)
    xu_ref = jnp.broadcast_to(
        x[:, :, :, None, :, None], (B, C, H, 2, W, 2)
    ).reshape(B, C, 2 * H, 2 * W)
    ref = jax.lax.conv_general_dilated(
        xu_ref, w, window_strides=(1, 1), padding=((1, 1), (1, 1)),
        dimension_numbers=("NCHW", "OIHW", "NCHW"),
    ) + b[None, :, None, None]

    assert out.shape == (B, C, 2 * H, 2 * W), out.shape
    err = float(jnp.max(jnp.abs(out - ref)))
    assert jnp.allclose(out, ref, atol=1e-4, rtol=1e-4), err

    print("KERNEL_OK")
</pallas_src>

<mosaic_0001>
module attributes {stable_mosaic.version = 11 : i64} {
  func.func @_upsample_conv_kernel(%arg0: i32, %arg1: memref<16x16x512xf32, #tpu.memory_space<vmem>>, %arg2: memref<16x16x512xf32, #tpu.memory_space<vmem>>, %arg3: memref<16x512xf32, #tpu.memory_space<vmem>>, %arg4: memref<16x512xf32, #tpu.memory_space<vmem>>) attributes {dimension_semantics = [#tpu.dimension_semantics<arbitrary>], iteration_bounds = array<i64: 1>, scalar_prefetch = 0 : i64, scratch_operands = 0 : i64, tpu.core_type = #tpu.core_type<tc>, window_params = [{pipeline_mode = #tpu.pipeline_mode<synchronous>, transform_indices = @transform_0, window_bounds = array<i64: 16, 16, 512>}, {pipeline_mode = #tpu.pipeline_mode<synchronous>, transform_indices = @transform_1, window_bounds = array<i64: 16, 16, 512>}, {pipeline_mode = #tpu.pipeline_mode<synchronous>, transform_indices = @transform_2, window_bounds = array<i64: 16, 512>}, {pipeline_mode = #tpu.pipeline_mode<synchronous>, transform_indices = @transform_3, window_bounds = array<i64: 16, 512>}]} {
    %c0 = arith.constant 0 : index
    %c0_0 = arith.constant 0 : index
    %0 = vector.load %arg3[%c0, %c0_0] : memref<16x512xf32, #tpu.memory_space<vmem>>, vector<16x512xf32>
    %c0_1 = arith.constant 0 : index
    %c0_2 = arith.constant 0 : index
    %c0_3 = arith.constant 0 : index
    %1 = vector.load %arg1[%c0_1, %c0_2, %c0_3] : memref<16x16x512xf32, #tpu.memory_space<vmem>>, vector<1x16x512xf32>
    %2 = vector.shape_cast %1 : vector<1x16x512xf32> to vector<16x512xf32>
    %c0_4 = arith.constant 0 : index
    %c0_5 = arith.constant 0 : index
    %c0_6 = arith.constant 0 : index
    %3 = vector.load %arg2[%c0_4, %c0_5, %c0_6] : memref<16x16x512xf32, #tpu.memory_space<vmem>>, vector<1x16x512xf32>
    %4 = vector.shape_cast %3 : vector<1x16x512xf32> to vector<16x512xf32>
    %5 = arith.mulf %2, %4 : vector<16x512xf32>
    %6 = arith.addf %0, %5 : vector<16x512xf32>
    %c1 = arith.constant 1 : index
    %c0_7 = arith.constant 0 : index
    %c0_8 = arith.constant 0 : index
    %7 = vector.load %arg1[%c1, %c0_7, %c0_8] : memref<16x16x512xf32, #tpu.memory_space<vmem>>, vector<1x16x512xf32>
    %8 = vector.shape_cast %7 : vector<1x16x512xf32> to vector<16x512xf32>
    %c1_9 = arith.constant 1 : index
    %c0_10 = arith.constant 0 : index
    %c0_11 = arith.constant 0 : index
    %9 = vector.load %arg2[%c1_9, %c0_10, %c0_11] : memref<16x16x512xf32, #tpu.memory_space<vmem>>, vector<1x16x512xf32>
    %10 = vector.shape_cast %9 : vector<1x16x512xf32> to vector<16x512xf32>
    %11 = arith.mulf %8, %10 : vector<16x512xf32>
    %12 = arith.addf %6, %11 : vector<16x512xf32>
    %c2 = arith.constant 2 : index
    %c0_12 = arith.constant 0 : index
    %c0_13 = arith.constant 0 : index
    %13 = vector.load %arg1[%c2, %c0_12, %c0_13] : memref<16x16x512xf32, #tpu.memory_space<vmem>>, vector<1x16x512xf32>
    %14 = vector.shape_cast %13 : vector<1x16x512xf32> to vector<16x512xf32>
    %c2_14 = arith.constant 2 : index
    %c0_15 = arith.constant 0 : index
    %c0_16 = arith.constant 0 : index
    %15 = vector.load %arg2[%c2_14, %c0_15, %c0_16] : memref<16x16x512xf32, #tpu.memory_space<vmem>>, vector<1x16x512xf32>
    %16 = vector.shape_cast %15 : vector<1x16x512xf32> to vector<16x512xf32>
    %17 = arith.mulf %14, %16 : vector<16x512xf32>
    %18 = arith.addf %12, %17 : vector<16x512xf32>
    %c3 = arith.constant 3 : index
    %c0_17 = arith.constant 0 : index
    %c0_18 = arith.constant 0 : index
    %19 = vector.load %arg1[%c3, %c0_17, %c0_18] : memref<16x16x512xf32, #tpu.memory_space<vmem>>, vector<1x16x512xf32>
    %20 = vector.shape_cast %19 : vector<1x16x512xf32> to vector<16x512xf32>
    %c3_19 = arith.constant 3 : index
    %c0_20 = arith.constant 0 : index
    %c0_21 = arith.constant 0 : index
    %21 = vector.load %arg2[%c3_19, %c0_20, %c0_21] : memref<16x16x512xf32, #tpu.memory_space<vmem>>, vector<1x16x512xf32>
    %22 = vector.shape_cast %21 : vector<1x16x512xf32> to vector<16x512xf32>
    %23 = arith.mulf %20, %22 : vector<16x512xf32>
    %24 = arith.addf %18, %23 : vector<16x512xf32>
    %c4 = arith.constant 4 : index
    %c0_22 = arith.constant 0 : index
    %c0_23 = arith.constant 0 : index
    %25 = vector.load %arg1[%c4, %c0_22, %c0_23] : memref<16x16x512xf32, #tpu.memory_space<vmem>>, vector<1x16x512xf32>
    %26 = vector.shape_cast %25 : vector<1x16x512xf32> to vector<16x512xf32>
    %c4_24 = arith.constant 4 : index
    %c0_25 = arith.constant 0 : index
    %c0_26 = arith.constant 0 : index
    %27 = vector.load %arg2[%c4_24, %c0_25, %c0_26] : memref<16x16x512xf32, #tpu.memory_space<vmem>>, vector<1x16x512xf32>
    %28 = vector.shape_cast %27 : vector<1x16x512xf32> to vector<16x512xf32>
    %29 = arith.mulf %26, %28 : vector<16x512xf32>
    %30 = arith.addf %24, %29 : vector<16x512xf32>
    %c5 = arith.constant 5 : index
    %c0_27 = arith.constant 0 : index
    %c0_28 = arith.constant 0 : index
    %31 = vector.load %arg1[%c5, %c0_27, %c0_28] : memref<16x16x512xf32, #tpu.memory_space<vmem>>, vector<1x16x512xf32>
    %32 = vector.shape_cast %31 : vector<1x16x512xf32> to vector<16x512xf32>
    %c5_29 = arith.constant 5 : index
    %c0_30 = arith.constant 0 : index
    %c0_31 = arith.constant 0 : index
    %33 = vector.load %arg2[%c5_29, %c0_30, %c0_31] : memref<16x16x512xf32, #tpu.memory_space<vmem>>, vector<1x16x512xf32>
    %34 = vector.shape_cast %33 : vector<1x16x512xf32> to vector<16x512xf32>
    %35 = arith.mulf %32, %34 : vector<16x512xf32>
    %36 = arith.addf %30, %35 : vector<16x512xf32>
    %c6 = arith.constant 6 : index
    %c0_32 = arith.constant 0 : index
    %c0_33 = arith.constant 0 : index
    %37 = vector.load %arg1[%c6, %c0_32, %c0_33] : memref<16x16x512xf32, #tpu.memory_space<vmem>>, vector<1x16x512xf32>
    %38 = vector.shape_cast %37 : vector<1x16x512xf32> to vector<16x512xf32>
    %c6_34 = arith.constant 6 : index
    %c0_35 = arith.constant 0 : index
    %c0_36 = arith.constant 0 : index
    %39 = vector.load %arg2[%c6_34, %c0_35, %c0_36] : memref<16x16x512xf32, #tpu.memory_space<vmem>>, vector<1x16x512xf32>
    %40 = vector.shape_cast %39 : vector<1x16x512xf32> to vector<16x512xf32>
    %41 = arith.mulf %38, %40 : vector<16x512xf32>
    %42 = arith.addf %36, %41 : vector<16x512xf32>
    %c7 = arith.constant 7 : index
    %c0_37 = arith.constant 0 : index
    %c0_38 = arith.constant 0 : index
    %43 = vector.load %arg1[%c7, %c0_37, %c0_38] : memref<16x16x512xf32, #tpu.memory_space<vmem>>, vector<1x16x512xf32>
    %44 = vector.shape_cast %43 : vector<1x16x512xf32> to vector<16x512xf32>
    %c7_39 = arith.constant 7 : index
    %c0_40 = arith.constant 0 : index
    %c0_41 = arith.constant 0 : index
    %45 = vector.load %arg2[%c7_39, %c0_40, %c0_41] : memref<16x16x512xf32, #tpu.memory_space<vmem>>, vector<1x16x512xf32>
    %46 = vector.shape_cast %45 : vector<1x16x512xf32> to vector<16x512xf32>
    %47 = arith.mulf %44, %46 : vector<16x512xf32>
    %48 = arith.addf %42, %47 : vector<16x512xf32>
    %c8 = arith.constant 8 : index
    %c0_42 = arith.constant 0 : index
    %c0_43 = arith.constant 0 : index
    %49 = vector.load %arg1[%c8, %c0_42, %c0_43] : memref<16x16x512xf32, #tpu.memory_space<vmem>>, vector<1x16x512xf32>
    %50 = vector.shape_cast %49 : vector<1x16x512xf32> to vector<16x512xf32>
    %c8_44 = arith.constant 8 : index
    %c0_45 = arith.constant 0 : index
    %c0_46 = arith.constant 0 : index
    %51 = vector.load %arg2[%c8_44, %c0_45, %c0_46] : memref<16x16x512xf32, #tpu.memory_space<vmem>>, vector<1x16x512xf32>
    %52 = vector.shape_cast %51 : vector<1x16x512xf32> to vector<16x512xf32>
    %53 = arith.mulf %50, %52 : vector<16x512xf32>
    %54 = arith.addf %48, %53 : vector<16x512xf32>
    %c9 = arith.constant 9 : index
    %c0_47 = arith.constant 0 : index
    %c0_48 = arith.constant 0 : index
    %55 = vector.load %arg1[%c9, %c0_47, %c0_48] : memref<16x16x512xf32, #tpu.memory_space<vmem>>, vector<1x16x512xf32>
    %56 = vector.shape_cast %55 : vector<1x16x512xf32> to vector<16x512xf32>
    %c9_49 = arith.constant 9 : index
    %c0_50 = arith.constant 0 : index
    %c0_51 = arith.constant 0 : index
    %57 = vector.load %arg2[%c9_49, %c0_50, %c0_51] : memref<16x16x512xf32, #tpu.memory_space<vmem>>, vector<1x16x512xf32>
    %58 = vector.shape_cast %57 : vector<1x16x512xf32> to vector<16x512xf32>
    %59 = arith.mulf %56, %58 : vector<16x512xf32>
    %60 = arith.addf %54, %59 : vector<16x512xf32>
    %c10 = arith.constant 10 : index
    %c0_52 = arith.constant 0 : index
    %c0_53 = arith.constant 0 : index
    %61 = vector.load %arg1[%c10, %c0_52, %c0_53] : memref<16x16x512xf32, #tpu.memory_space<vmem>>, vector<1x16x512xf32>
    %62 = vector.shape_cast %61 : vector<1x16x512xf32> to vector<16x512xf32>
    %c10_54 = arith.constant 10 : index
    %c0_55 = arith.constant 0 : index
    %c0_56 = arith.constant 0 : index
    %63 = vector.load %arg2[%c10_54, %c0_55, %c0_56] : memref<16x16x512xf32, #tpu.memory_space<vmem>>, vector<1x16x512xf32>
    %64 = vector.shape_cast %63 : vector<1x16x512xf32> to vector<16x512xf32>
    %65 = arith.mulf %62, %64 : vector<16x512xf32>
    %66 = arith.addf %60, %65 : vector<16x512xf32>
    %c11 = arith.constant 11 : index
    %c0_57 = arith.constant 0 : index
    %c0_58 = arith.constant 0 : index
    %67 = vector.load %arg1[%c11, %c0_57, %c0_58] : memref<16x16x512xf32, #tpu.memory_space<vmem>>, vector<1x16x512xf32>
    %68 = vector.shape_cast %67 : vector<1x16x512xf32> to vector<16x512xf32>
    %c11_59 = arith.constant 11 : index
    %c0_60 = arith.constant 0 : index
    %c0_61 = arith.constant 0 : index
    %69 = vector.load %arg2[%c11_59, %c0_60, %c0_61] : memref<16x16x512xf32, #tpu.memory_space<vmem>>, vector<1x16x512xf32>
    %70 = vector.shape_cast %69 : vector<1x16x512xf32> to vector<16x512xf32>
    %71 = arith.mulf %68, %70 : vector<16x512xf32>
    %72 = arith.addf %66, %71 : vector<16x512xf32>
    %c12 = arith.constant 12 : index
    %c0_62 = arith.constant 0 : index
    %c0_63 = arith.constant 0 : index
    %73 = vector.load %arg1[%c12, %c0_62, %c0_63] : memref<16x16x512xf32, #tpu.memory_space<vmem>>, vector<1x16x512xf32>
    %74 = vector.shape_cast %73 : vector<1x16x512xf32> to vector<16x512xf32>
    %c12_64 = arith.constant 12 : index
    %c0_65 = arith.constant 0 : index
    %c0_66 = arith.constant 0 : index
    %75 = vector.load %arg2[%c12_64, %c0_65, %c0_66] : memref<16x16x512xf32, #tpu.memory_space<vmem>>, vector<1x16x512xf32>
    %76 = vector.shape_cast %75 : vector<1x16x512xf32> to vector<16x512xf32>
    %77 = arith.mulf %74, %76 : vector<16x512xf32>
    %78 = arith.addf %72, %77 : vector<16x512xf32>
    %c13 = arith.constant 13 : index
    %c0_67 = arith.constant 0 : index
    %c0_68 = arith.constant 0 : index
    %79 = vector.load %arg1[%c13, %c0_67, %c0_68] : memref<16x16x512xf32, #tpu.memory_space<vmem>>, vector<1x16x512xf32>
    %80 = vector.shape_cast %79 : vector<1x16x512xf32> to vector<16x512xf32>
    %c13_69 = arith.constant 13 : index
    %c0_70 = arith.constant 0 : index
    %c0_71 = arith.constant 0 : index
    %81 = vector.load %arg2[%c13_69, %c0_70, %c0_71] : memref<16x16x512xf32, #tpu.memory_space<vmem>>, vector<1x16x512xf32>
    %82 = vector.shape_cast %81 : vector<1x16x512xf32> to vector<16x512xf32>
    %83 = arith.mulf %80, %82 : vector<16x512xf32>
    %84 = arith.addf %78, %83 : vector<16x512xf32>
    %c14 = arith.constant 14 : index
    %c0_72 = arith.constant 0 : index
    %c0_73 = arith.constant 0 : index
    %85 = vector.load %arg1[%c14, %c0_72, %c0_73] : memref<16x16x512xf32, #tpu.memory_space<vmem>>, vector<1x16x512xf32>
    %86 = vector.shape_cast %85 : vector<1x16x512xf32> to vector<16x512xf32>
    %c14_74 = arith.constant 14 : index
    %c0_75 = arith.constant 0 : index
    %c0_76 = arith.constant 0 : index
    %87 = vector.load %arg2[%c14_74, %c0_75, %c0_76] : memref<16x16x512xf32, #tpu.memory_space<vmem>>, vector<1x16x512xf32>
    %88 = vector.shape_cast %87 : vector<1x16x512xf32> to vector<16x512xf32>
    %89 = arith.mulf %86, %88 : vector<16x512xf32>
    %90 = arith.addf %84, %89 : vector<16x512xf32>
    %c15 = arith.constant 15 : index
    %c0_77 = arith.constant 0 : index
    %c0_78 = arith.constant 0 : index
    %91 = vector.load %arg1[%c15, %c0_77, %c0_78] : memref<16x16x512xf32, #tpu.memory_space<vmem>>, vector<1x16x512xf32>
    %92 = vector.shape_cast %91 : vector<1x16x512xf32> to vector<16x512xf32>
    %c15_79 = arith.constant 15 : index
    %c0_80 = arith.constant 0 : index
    %c0_81 = arith.constant 0 : index
    %93 = vector.load %arg2[%c15_79, %c0_80, %c0_81] : memref<16x16x512xf32, #tpu.memory_space<vmem>>, vector<1x16x512xf32>
    %94 = vector.shape_cast %93 : vector<1x16x512xf32> to vector<16x512xf32>
    %95 = arith.mulf %92, %94 : vector<16x512xf32>
    %96 = arith.addf %90, %95 : vector<16x512xf32>
    %c0_82 = arith.constant 0 : index
    %c0_83 = arith.constant 0 : index
    %97 = vector.load %arg4[%c0_82, %c0_83] : memref<16x512xf32, #tpu.memory_space<vmem>>, vector<16x512xf32>
    tpu.vector_store %arg4[%c0_82, %c0_83], %96 {strides = array<i32>} : memref<16x512xf32, #tpu.memory_space<vmem>>, vector<16x512xf32>,
    return
  }
  func.func @transform_0(%arg0: i32) -> (i32, i32, i32) {
    %c0_i32 = arith.constant 0 : i32
    %c0_i32_0 = arith.constant 0 : i32
    %c0_i32_1 = arith.constant 0 : i32
    %c0_i32_2 = arith.constant 0 : i32
    return %c0_i32, %c0_i32_0, %c0_i32_1 : i32, i32, i32
  }
  func.func @transform_1(%arg0: i32) -> (i32, i32, i32) {
    %c0_i32 = arith.constant 0 : i32
    %c0_i32_0 = arith.constant 0 : i32
    %c0_i32_1 = arith.constant 0 : i32
    %c0_i32_2 = arith.constant 0 : i32
    return %c0_i32, %c0_i32_0, %c0_i32_1 : i32, i32, i32
  }
  func.func @transform_2(%arg0: i32) -> (i32, i32) {
    %c0_i32 = arith.constant 0 : i32
    %c0_i32_0 = arith.constant 0 : i32
    %c0_i32_1 = arith.constant 0 : i32
    return %c0_i32, %c0_i32_0 : i32, i32
  }
  func.func @transform_3(%arg0: i32) -> (i32, i32) {
    %c0_i32 = arith.constant 0 : i32
    %c0_i32_0 = arith.constant 0 : i32
    %c0_i32_1 = arith.constant 0 : i32
    return %c0_i32, %c0_i32_0 : i32, i32
  }
}

</mosaic_0001>

<llo_original>
// kernel: tpu_custom_call.1
$region0: #{tpu_custom_call.1}
  #allocation0 [shape = 'u32[]', space=smem, size = 0x4, offset = 0x4, fixed_abs, tag = 'smem constant byte address 0x4 - core index']
  #allocation1 [shape = 'u32[144,128]{1,0:T(1,128)}', space=vmem, size = 0x12000, scoped, tag = 'internal scratch']
  %s0 = inlined_call_operand.hbm [shape: f32[16,16,512], index: 0, kind: input, shape index: {}]
  %s1 = inlined_call_operand.hbm [shape: f32[16,16,512], index: 1, kind: input, shape index: {}]
  %s2 = inlined_call_operand.hbm [shape: f32[16,512], index: 2, kind: input, shape index: {}]
  %s3 = inlined_call_operand.hbm [shape: f32[16,512], index: 3, kind: output, shape index: {}]
  %s4 = sld [smem:[#allocation0]]
  $region34: #{tpu_custom_call.1} parent=0
    _
  %s6 = ssub.s32 1, %s4
  %s7 = scalar_select 0, %s6, %s4
  $region1: #{tpu_custom_call.1} parent=0
    #allocation2 [shape = 'u8[524288]{0}', space=vmem, size = 0x80000, scoped, tag = 'input window, operand 0, single buffered']
    #allocation3 [shape = 's32[1]{0}', space=sflag, size = 0x4, scoped, tag = 'scoped memory for tpu_custom_call.1']
    #allocation4 [shape = 's32[1]{0}', space=sflag, size = 0x4, scoped, tag = 'scoped memory for tpu_custom_call.1']
    #allocation5 [shape = 'u8[524288]{0}', space=vmem, size = 0x80000, scoped, tag = 'input window, operand 1, single buffered']
    #allocation6 [shape = 's32[1]{0}', space=sflag, size = 0x4, scoped, tag = 'scoped memory for tpu_custom_call.1']
    #allocation7 [shape = 'u8[32768]{0}', space=vmem, size = 0x8000, scoped, tag = 'input window, operand 2, single buffered']
    #allocation8 [shape = 'u8[32768]{0}', space=vmem, size = 0x8000, scoped, tag = 'output window, operand 0, single buffered']
    %8 = vsyncpa [#allocation3], 0
    %9 = vsyncpa [#allocation6], 0
    %10 = vsyncpa [#allocation4], 0
    // Predicated region
    $region2: #{tpu_custom_call.1} parent=1 // pred_check
      _
    $region3: #{tpu_custom_call.1} parent=1 // pred_check_branch
      %12 = sbr.rel (0) target = $region5
    $region4: #{tpu_custom_call.1} parent=1 // pred_region
      %s14 = ssub.s32 16384, 16384
      %15 = vsyncadd [#allocation3], %s14
      %s16 = sshll.u32 [#allocation2], 4
      %s17 = int_to_ptr.vmem [resolvable:$true] %s16
      %22 = dma.hbm_to_vmem [thread:$0]  %s0, 16384, %s17, [#allocation3], 512, 512, 32
    $region5: #{tpu_custom_call.1} parent=1 // pred_fallthru
      _
    // Predicated region
    $region6: #{tpu_custom_call.1} parent=1 // pred_check
      _
    $region7: #{tpu_custom_call.1} parent=1 // pred_check_branch
      %24 = sbr.rel (0) target = $region9
    $region8: #{tpu_custom_call.1} parent=1 // pred_region
      %s26 = ssub.s32 16384, 16384
      %27 = vsyncadd [#allocation6], %s26
      %s28 = sshll.u32 [#allocation5], 4
      %s29 = int_to_ptr.vmem [resolvable:$true] %s28
      %34 = dma.hbm_to_vmem [thread:$0]  %s1, 16384, %s29, [#allocation6], 512, 512, 32
    $region9: #{tpu_custom_call.1} parent=1 // pred_fallthru
      _
    // Predicated region
    $region10: #{tpu_custom_call.1} parent=1 // pred_check
      _
    $region11: #{tpu_custom_call.1} parent=1 // pred_check_branch
      %36 = sbr.rel (0) target = $region13
    $region12: #{tpu_custom_call.1} parent=1 // pred_region
      %s38 = ssub.s32 1024, 1024
      %39 = vsyncadd [#allocation6], %s38
      %s40 = sshll.u32 [#allocation7], 4
      %s41 = int_to_ptr.vmem [resolvable:$true] %s40
      %46 = dma.hbm_to_vmem [thread:$0]  %s2, 1024, %s41, [#allocation6], 512, 512, 32
    $region13: #{tpu_custom_call.1} parent=1 // pred_fallthru
      _
    // Predicated region
    $region14: #{tpu_custom_call.1} parent=1 // pred_check
      _
    $region15: #{tpu_custom_call.1} parent=1 // pred_check_branch
      %48 = sbr.rel (0) target = $region17
    $region16: #{tpu_custom_call.1} parent=1 // pred_region
      %49 = dma.done [#allocation3], 16384
    $region17: #{tpu_custom_call.1} parent=1 // pred_fallthru
      _
    // Predicated region
    $region18: #{tpu_custom_call.1} parent=1 // pred_check
      _
    $region19: #{tpu_custom_call.1} parent=1 // pred_check_branch
      %51 = sbr.rel (0) target = $region21
    $region20: #{tpu_custom_call.1} parent=1 // pred_region
      %52 = dma.done [#allocation6], 16384
    $region21: #{tpu_custom_call.1} parent=1 // pred_fallthru
      _
    // Predicated region
    $region22: #{tpu_custom_call.1} parent=1 // pred_check
      _
    $region23: #{tpu_custom_call.1} parent=1 // pred_check_branch
      %54 = sbr.rel (0) target = $region25
    $region24: #{tpu_custom_call.1} parent=1 // pred_region
      %55 = dma.done [#allocation6], 1024
    $region25: #{tpu_custom_call.1} parent=1 // pred_fallthru
      _
    %v56 = vld [vmem:[#allocation7] sm:$0xff]
    %v57 = vld [vmem:[#allocation7 + $0x8] sm:$0xff]
    %v58 = vld [vmem:[#allocation7 + $0x10] sm:$0xff]
    %v59 = vld [vmem:[#allocation7 + $0x18] sm:$0xff]
    %v60 = vld [vmem:[#allocation7 + $0x20] sm:$0xff]
    %v61 = vld [vmem:[#allocation7 + $0x28] sm:$0xff]
    %v62 = vld [vmem:[#allocation7 + $0x30] sm:$0xff]
    %v63 = vld [vmem:[#allocation7 + $0x38] sm:$0xff]
    %v64 = vld [vmem:[#allocation2] sm:$0xff]
    %v65 = vld [vmem:[#allocation2 + $0x8] sm:$0xff]
    %v66 = vld [vmem:[#allocation2 + $0x10] sm:$0xff]
    %v67 = vld [vmem:[#allocation2 + $0x18] sm:$0xff]
    %v68 = vld [vmem:[#allocation2 + $0x20] sm:$0xff]
    %v69 = vld [vmem:[#allocation2 + $0x28] sm:$0xff]
    %v70 = vld [vmem:[#allocation2 + $0x30] sm:$0xff]
    %v71 = vld [vmem:[#allocation2 + $0x38] sm:$0xff]
    %v72 = vld [vmem:[#allocation5] sm:$0xff]
    %v73 = vld [vmem:[#allocation5 + $0x8] sm:$0xff]
    %v74 = vld [vmem:[#allocation5 + $0x10] sm:$0xff]
    %v75 = vld [vmem:[#allocation5 + $0x18] sm:$0xff]
    %v76 = vld [vmem:[#allocation5 + $0x20] sm:$0xff]
    %v77 = vld [vmem:[#allocation5 + $0x28] sm:$0xff]
    %v78 = vld [vmem:[#allocation5 + $0x30] sm:$0xff]
    %v79 = vld [vmem:[#allocation5 + $0x38] sm:$0xff]
    %v80 = vmul.f32 %v64, %v72
    %v81 = vmul.f32 %v65, %v73
    %v82 = vmul.f32 %v66, %v74
    %v83 = vmul.f32 %v67, %v75
    %v84 = vmul.f32 %v68, %v76
    %v85 = vmul.f32 %v69, %v77
    %v86 = vmul.f32 %v70, %v78
    %v87 = vmul.f32 %v71, %v79
    %v88 = vadd.f32 %v56, %v80
    %v89 = vadd.f32 %v57, %v81
    %v90 = vadd.f32 %v58, %v82
    %v91 = vadd.f32 %v59, %v83
    %v92 = vadd.f32 %v60, %v84
    %v93 = vadd.f32 %v61, %v85
    %v94 = vadd.f32 %v62, %v86
    %v95 = vadd.f32 %v63, %v87
    %s96 = scalar_lea.vmem [#allocation2], 64
    %v97 = vld [vmem:[%s96] sm:$0xff]
    %v98 = vld [vmem:[%s96 + $0x8] sm:$0xff]
    %v99 = vld [vmem:[%s96 + $0x10] sm:$0xff]
    %v100 = vld [vmem:[%s96 + $0x18] sm:$0xff]
    %v101 = vld [vmem:[%s96 + $0x20] sm:$0xff]
    %v102 = vld [vmem:[%s96 + $0x28] sm:$0xff]
    %v103 = vld [vmem:[%s96 + $0x30] sm:$0xff]
    %v104 = vld [vmem:[%s96 + $0x38] sm:$0xff]
    %s105 = scalar_lea.vmem [#allocation5], 64
    %v106 = vld [vmem:[%s105] sm:$0xff]
    %v107 = vld [vmem:[%s105 + $0x8] sm:$0xff]
    %v108 = vld [vmem:[%s105 + $0x10] sm:$0xff]
    %v109 = vld [vmem:[%s105 + $0x18] sm:$0xff]
    %v110 = vld [vmem:[%s105 + $0x20] sm:$0xff]
    %v111 = vld [vmem:[%s105 + $0x28] sm:$0xff]
    %v112 = vld [vmem:[%s105 + $0x30] sm:$0xff]
    %v113 = vld [vmem:[%s105 + $0x38] sm:$0xff]
    %v114 = vmul.f32 %v97, %v106
    %v115 = vmul.f32 %v98, %v107
    %v116 = vmul.f32 %v99, %v108
    %v117 = vmul.f32 %v100, %v109
    %v118 = vmul.f32 %v101, %v110
    %v119 = vmul.f32 %v102, %v111
    %v120 = vmul.f32 %v103, %v112
    %v121 = vmul.f32 %v104, %v113
    %v122 = vadd.f32 %v88, %v114
    %v123 = vadd.f32 %v89, %v115
    %v124 = vadd.f32 %v90, %v116
    %v125 = vadd.f32 %v91, %v117
    %v126 = vadd.f32 %v92, %v118
    %v127 = vadd.f32 %v93, %v119
    %v128 = vadd.f32 %v94, %v120
    %v129 = vadd.f32 %v95, %v121
    %s130 = scalar_lea.vmem [#allocation2], 128
    %v131 = vld [vmem:[%s130] sm:$0xff]
    %v132 = vld [vmem:[%s130 + $0x8] sm:$0xff]
    %v133 = vld [vmem:[%s130 + $0x10] sm:$0xff]
    %v134 = vld [vmem:[%s130 + $0x18] sm:$0xff]
    %v135 = vld [vmem:[%s130 + $0x20] sm:$0xff]
    %v136 = vld [vmem:[%s130 + $0x28] sm:$0xff]
    %v137 = vld [vmem:[%s130 + $0x30] sm:$0xff]
    %v138 = vld [vmem:[%s130 + $0x38] sm:$0xff]
    %s139 = scalar_lea.vmem [#allocation5], 128
    %v140 = vld [vmem:[%s139] sm:$0xff]
    %v141 = vld [vmem:[%s139 + $0x8] sm:$0xff]
    %v142 = vld [vmem:[%s139 + $0x10] sm:$0xff]
    %v143 = vld [vmem:[%s139 + $0x18] sm:$0xff]
    %v144 = vld [vmem:[%s139 + $0x20] sm:$0xff]
    %v145 = vld [vmem:[%s139 + $0x28] sm:$0xff]
    %v146 = vld [vmem:[%s139 + $0x30] sm:$0xff]
    %v147 = vld [vmem:[%s139 + $0x38] sm:$0xff]
    %v148 = vmul.f32 %v131, %v140
    %v149 = vmul.f32 %v132, %v141
    %v150 = vmul.f32 %v133, %v142
    %v151 = vmul.f32 %v134, %v143
    %v152 = vmul.f32 %v135, %v144
    %v153 = vmul.f32 %v136, %v145
    %v154 = vmul.f32 %v137, %v146
    %v155 = vmul.f32 %v138, %v147
    %v156 = vadd.f32 %v122, %v148
    %v157 = vadd.f32 %v123, %v149
    %v158 = vadd.f32 %v124, %v150
    %v159 = vadd.f32 %v125, %v151
    %v160 = vadd.f32 %v126, %v152
    %v161 = vadd.f32 %v127, %v153
    %v162 = vadd.f32 %v128, %v154
    %v163 = vadd.f32 %v129, %v155
    %s164 = scalar_lea.vmem [#allocation2], 192
    %v165 = vld [vmem:[%s164] sm:$0xff]
    %v166 = vld [vmem:[%s164 + $0x8] sm:$0xff]
    %v167 = vld [vmem:[%s164 + $0x10] sm:$0xff]
    %v168 = vld [vmem:[%s164 + $0x18] sm:$0xff]
    %v169 = vld [vmem:[%s164 + $0x20] sm:$0xff]
    %v170 = vld [vmem:[%s164 + $0x28] sm:$0xff]
    %v171 = vld [vmem:[%s164 + $0x30] sm:$0xff]
    %v172 = vld [vmem:[%s164 + $0x38] sm:$0xff]
    %s173 = scalar_lea.vmem [#allocation5], 192
    %v174 = vld [vmem:[%s173] sm:$0xff]
    %v175 = vld [vmem:[%s173 + $0x8] sm:$0xff]
    %v176 = vld [vmem:[%s173 + $0x10] sm:$0xff]
    %v177 = vld [vmem:[%s173 + $0x18] sm:$0xff]
    %v178 = vld [vmem:[%s173 + $0x20] sm:$0xff]
    %v179 = vld [vmem:[%s173 + $0x28] sm:$0xff]
    %v180 = vld [vmem:[%s173 + $0x30] sm:$0xff]
    %v181 = vld [vmem:[%s173 + $0x38] sm:$0xff]
    %v182 = vmul.f32 %v165, %v174
    %v183 = vmul.f32 %v166, %v175
    %v184 = vmul.f32 %v167, %v176
    %v185 = vmul.f32 %v168, %v177
    %v186 = vmul.f32 %v169, %v178
    %v187 = vmul.f32 %v170, %v179
    %v188 = vmul.f32 %v171, %v180
    %v189 = vmul.f32 %v172, %v181
    %v190 = vadd.f32 %v156, %v182
    %v191 = vadd.f32 %v157, %v183
    %v192 = vadd.f32 %v158, %v184
    %v193 = vadd.f32 %v159, %v185
    %v194 = vadd.f32 %v160, %v186
    %v195 = vadd.f32 %v161, %v187
    %v196 = vadd.f32 %v162, %v188
    %v197 = vadd.f32 %v163, %v189
    %s198 = scalar_lea.vmem [#allocation2], 256
    %v199 = vld [vmem:[%s198] sm:$0xff]
    %v200 = vld [vmem:[%s198 + $0x8] sm:$0xff]
    %v201 = vld [vmem:[%s198 + $0x10] sm:$0xff]
    %v202 = vld [vmem:[%s198 + $0x18] sm:$0xff]
    %v203 = vld [vmem:[%s198 + $0x20] sm:$0xff]
    %v204 = vld [vmem:[%s198 + $0x28] sm:$0xff]
    %v205 = vld [vmem:[%s198 + $0x30] sm:$0xff]
    %v206 = vld [vmem:[%s198 + $0x38] sm:$0xff]
    %s207 = scalar_lea.vmem [#allocation5], 256
    %v208 = vld [vmem:[%s207] sm:$0xff]
    %v209 = vld [vmem:[%s207 + $0x8] sm:$0xff]
    %v210 = vld [vmem:[%s207 + $0x10] sm:$0xff]
    %v211 = vld [vmem:[%s207 + $0x18] sm:$0xff]
    %v212 = vld [vmem:[%s207 + $0x20] sm:$0xff]
    %v213 = vld [vmem:[%s207 + $0x28] sm:$0xff]
    %v214 = vld [vmem:[%s207 + $0x30] sm:$0xff]
    %v215 = vld [vmem:[%s207 + $0x38] sm:$0xff]
    %v216 = vmul.f32 %v199, %v208
    %v217 = vmul.f32 %v200, %v209
    %v218 = vmul.f32 %v201, %v210
    %v219 = vmul.f32 %v202, %v211
    %v220 = vmul.f32 %v203, %v212
    %v221 = vmul.f32 %v204, %v213
    %v222 = vmul.f32 %v205, %v214
    %v223 = vmul.f32 %v206, %v215
    %v224 = vadd.f32 %v190, %v216
    %v225 = vadd.f32 %v191, %v217
    %v226 = vadd.f32 %v192, %v218
    %v227 = vadd.f32 %v193, %v219
    %v228 = vadd.f32 %v194, %v220
    %v229 = vadd.f32 %v195, %v221
    %v230 = vadd.f32 %v196, %v222
    %v231 = vadd.f32 %v197, %v223
    %s232 = scalar_lea.vmem [#allocation2], 320
    %v233 = vld [vmem:[%s232] sm:$0xff]
    %v234 = vld [vmem:[%s232 + $0x8] sm:$0xff]
    %v235 = vld [vmem:[%s232 + $0x10] sm:$0xff]
    %v236 = vld [vmem:[%s232 + $0x18] sm:$0xff]
    %v237 = vld [vmem:[%s232 + $0x20] sm:$0xff]
    %v238 = vld [vmem:[%s232 + $0x28] sm:$0xff]
    %v239 = vld [vmem:[%s232 + $0x30] sm:$0xff]
    %v240 = vld [vmem:[%s232 + $0x38] sm:$0xff]
    %s241 = scalar_lea.vmem [#allocation5], 320
    %v242 = vld [vmem:[%s241] sm:$0xff]
    %v243 = vld [vmem:[%s241 + $0x8] sm:$0xff]
    %v244 = vld [vmem:[%s241 + $0x10] sm:$0xff]
    %v245 = vld [vmem:[%s241 + $0x18] sm:$0xff]
    %v246 = vld [vmem:[%s241 + $0x20] sm:$0xff]
    %v247 = vld [vmem:[%s241 + $0x28] sm:$0xff]
    %v248 = vld [vmem:[%s241 + $0x30] sm:$0xff]
    %v249 = vld [vmem:[%s241 + $0x38] sm:$0xff]
    %v250 = vmul.f32 %v233, %v242
    %v251 = vmul.f32 %v234, %v243
    %v252 = vmul.f32 %v235, %v244
    %v253 = vmul.f32 %v236, %v245
    %v254 = vmul.f32 %v237, %v246
    %v255 = vmul.f32 %v238, %v247
    %v256 = vmul.f32 %v239, %v248
    %v257 = vmul.f32 %v240, %v249
    %v258 = vadd.f32 %v224, %v250
    %v259 = vadd.f32 %v225, %v251
    %v260 = vadd.f32 %v226, %v252
    %v261 = vadd.f32 %v227, %v253
    %v262 = vadd.f32 %v228, %v254
    %v263 = vadd.f32 %v229, %v255
    %v264 = vadd.f32 %v230, %v256
    %v265 = vadd.f32 %v231, %v257
    %s266 = scalar_lea.vmem [#allocation2], 384
    %v267 = vld [vmem:[%s266] sm:$0xff]
    %v268 = vld [vmem:[%s266 + $0x8] sm:$0xff]
    %v269 = vld [vmem:[%s266 + $0x10] sm:$0xff]
    %v270 = vld [vmem:[%s266 + $0x18] sm:$0xff]
    %v271 = vld [vmem:[%s266 + $0x20] sm:$0xff]
    %v272 = vld [vmem:[%s266 + $0x28] sm:$0xff]
    %v273 = vld [vmem:[%s266 + $0x30] sm:$0xff]
    %v274 = vld [vmem:[%s266 + $0x38] sm:$0xff]
    %s275 = scalar_lea.vmem [#allocation5], 384
    %v276 = vld [vmem:[%s275] sm:$0xff]
    %v277 = vld [vmem:[%s275 + $0x8] sm:$0xff]
    %v278 = vld [vmem:[%s275 + $0x10] sm:$0xff]
    %v279 = vld [vmem:[%s275 + $0x18] sm:$0xff]
    %v280 = vld [vmem:[%s275 + $0x20] sm:$0xff]
    %v281 = vld [vmem:[%s275 + $0x28] sm:$0xff]
    %v282 = vld [vmem:[%s275 + $0x30] sm:$0xff]
    %v283 = vld [vmem:[%s275 + $0x38] sm:$0xff]
    %v284 = vmul.f32 %v267, %v276
    %v285 = vmul.f32 %v268, %v277
    %v286 = vmul.f32 %v269, %v278
    %v287 = vmul.f32 %v270, %v279
    %v288 = vmul.f32 %v271, %v280
    %v289 = vmul.f32 %v272, %v281
    %v290 = vmul.f32 %v273, %v282
    %v291 = vmul.f32 %v274, %v283
    %v292 = vadd.f32 %v258, %v284
    %v293 = vadd.f32 %v259, %v285
    %v294 = vadd.f32 %v260, %v286
    %v295 = vadd.f32 %v261, %v287
    %v296 = vadd.f32 %v262, %v288
    %v297 = vadd.f32 %v263, %v289
    %v298 = vadd.f32 %v264, %v290
    %v299 = vadd.f32 %v265, %v291
    %s300 = scalar_lea.vmem [#allocation2], 448
    %v301 = vld [vmem:[%s300] sm:$0xff]
    %v302 = vld [vmem:[%s300 + $0x8] sm:$0xff]
    %v303 = vld [vmem:[%s300 + $0x10] sm:$0xff]
    %v304 = vld [vmem:[%s300 + $0x18] sm:$0xff]
    %v305 = vld [vmem:[%s300 + $0x20] sm:$0xff]
    %v306 = vld [vmem:[%s300 + $0x28] sm:$0xff]
    %v307 = vld [vmem:[%s300 + $0x30] sm:$0xff]
    %v308 = vld [vmem:[%s300 + $0x38] sm:$0xff]
    %s309 = scalar_lea.vmem [#allocation5], 448
    %v310 = vld [vmem:[%s309] sm:$0xff]
    %v311 = vld [vmem:[%s309 + $0x8] sm:$0xff]
    %v312 = vld [vmem:[%s309 + $0x10] sm:$0xff]
    %v313 = vld [vmem:[%s309 + $0x18] sm:$0xff]
    %v314 = vld [vmem:[%s309 + $0x20] sm:$0xff]
    %v315 = vld [vmem:[%s309 + $0x28] sm:$0xff]
    %v316 = vld [vmem:[%s309 + $0x30] sm:$0xff]
    %v317 = vld [vmem:[%s309 + $0x38] sm:$0xff]
    %v318 = vmul.f32 %v301, %v310
    %v319 = vmul.f32 %v302, %v311
    %v320 = vmul.f32 %v303, %v312
    %v321 = vmul.f32 %v304, %v313
    %v322 = vmul.f32 %v305, %v314
    %v323 = vmul.f32 %v306, %v315
    %v324 = vmul.f32 %v307, %v316
    %v325 = vmul.f32 %v308, %v317
    %v326 = vadd.f32 %v292, %v318
    %v327 = vadd.f32 %v293, %v319
    %v328 = vadd.f32 %v294, %v320
    %v329 = vadd.f32 %v295, %v321
    %v330 = vadd.f32 %v296, %v322
    %v331 = vadd.f32 %v297, %v323
    %v332 = vadd.f32 %v298, %v324
    %v333 = vadd.f32 %v299, %v325
    %s334 = scalar_lea.vmem [#allocation2], 512
    %v335 = vld [vmem:[%s334] sm:$0xff]
    %v336 = vld [vmem:[%s334 + $0x8] sm:$0xff]
    %v337 = vld [vmem:[%s334 + $0x10] sm:$0xff]
    %v338 = vld [vmem:[%s334 + $0x18] sm:$0xff]
    %v339 = vld [vmem:[%s334 + $0x20] sm:$0xff]
    %v340 = vld [vmem:[%s334 + $0x28] sm:$0xff]
    %v341 = vld [vmem:[%s334 + $0x30] sm:$0xff]
    %v342 = vld [vmem:[%s334 + $0x38] sm:$0xff]
    %s343 = scalar_lea.vmem [#allocation5], 512
    %v344 = vld [vmem:[%s343] sm:$0xff]
    %v345 = vld [vmem:[%s343 + $0x8] sm:$0xff]
    %v346 = vld [vmem:[%s343 + $0x10] sm:$0xff]
    %v347 = vld [vmem:[%s343 + $0x18] sm:$0xff]
    %v348 = vld [vmem:[%s343 + $0x20] sm:$0xff]
    %v349 = vld [vmem:[%s343 + $0x28] sm:$0xff]
    %v350 = vld [vmem:[%s343 + $0x30] sm:$0xff]
    %v351 = vld [vmem:[%s343 + $0x38] sm:$0xff]
    %v352 = vmul.f32 %v335, %v344
    %v353 = vmul.f32 %v336, %v345
    %v354 = vmul.f32 %v337, %v346
    %v355 = vmul.f32 %v338, %v347
    %v356 = vmul.f32 %v339, %v348
    %v357 = vmul.f32 %v340, %v349
    %v358 = vmul.f32 %v341, %v350
    %v359 = vmul.f32 %v342, %v351
    %v360 = vadd.f32 %v326, %v352
    %v361 = vadd.f32 %v327, %v353
    %v362 = vadd.f32 %v328, %v354
    %v363 = vadd.f32 %v329, %v355
    %v364 = vadd.f32 %v330, %v356
    %v365 = vadd.f32 %v331, %v357
    %v366 = vadd.f32 %v332, %v358
    %v367 = vadd.f32 %v333, %v359
    %s368 = scalar_lea.vmem [#allocation2], 576
    %v369 = vld [vmem:[%s368] sm:$0xff]
    %v370 = vld [vmem:[%s368 + $0x8] sm:$0xff]
    %v371 = vld [vmem:[%s368 + $0x10] sm:$0xff]
    %v372 = vld [vmem:[%s368 + $0x18] sm:$0xff]
    %v373 = vld [vmem:[%s368 + $0x20] sm:$0xff]
    %v374 = vld [vmem:[%s368 + $0x28] sm:$0xff]
    %v375 = vld [vmem:[%s368 + $0x30] sm:$0xff]
    %v376 = vld [vmem:[%s368 + $0x38] sm:$0xff]
    %s377 = scalar_lea.vmem [#allocation5], 576
    %v378 = vld [vmem:[%s377] sm:$0xff]
    %v379 = vld [vmem:[%s377 + $0x8] sm:$0xff]
    %v380 = vld [vmem:[%s377 + $0x10] sm:$0xff]
    %v381 = vld [vmem:[%s377 + $0x18] sm:$0xff]
    %v382 = vld [vmem:[%s377 + $0x20] sm:$0xff]
    %v383 = vld [vmem:[%s377 + $0x28] sm:$0xff]
    %v384 = vld [vmem:[%s377 + $0x30] sm:$0xff]
    %v385 = vld [vmem:[%s377 + $0x38] sm:$0xff]
    %v386 = vmul.f32 %v369, %v378
    %v387 = vmul.f32 %v370, %v379
    %v388 = vmul.f32 %v371, %v380
    %v389 = vmul.f32 %v372, %v381
    %v390 = vmul.f32 %v373, %v382
    %v391 = vmul.f32 %v374, %v383
    %v392 = vmul.f32 %v375, %v384
    %v393 = vmul.f32 %v376, %v385
    %v394 = vadd.f32 %v360, %v386
    %v395 = vadd.f32 %v361, %v387
    %v396 = vadd.f32 %v362, %v388
    %v397 = vadd.f32 %v363, %v389
    %v398 = vadd.f32 %v364, %v390
    %v399 = vadd.f32 %v365, %v391
    %v400 = vadd.f32 %v366, %v392
    %v401 = vadd.f32 %v367, %v393
    %s402 = scalar_lea.vmem [#allocation2], 640
    %v403 = vld [vmem:[%s402] sm:$0xff]
    %v404 = vld [vmem:[%s402 + $0x8] sm:$0xff]
    %v405 = vld [vmem:[%s402 + $0x10] sm:$0xff]
    %v406 = vld [vmem:[%s402 + $0x18] sm:$0xff]
    %v407 = vld [vmem:[%s402 + $0x20] sm:$0xff]
    %v408 = vld [vmem:[%s402 + $0x28] sm:$0xff]
    %v409 = vld [vmem:[%s402 + $0x30] sm:$0xff]
    %v410 = vld [vmem:[%s402 + $0x38] sm:$0xff]
    %s411 = scalar_lea.vmem [#allocation5], 640
    %v412 = vld [vmem:[%s411] sm:$0xff]
    %v413 = vld [vmem:[%s411 + $0x8] sm:$0xff]
    %v414 = vld [vmem:[%s411 + $0x10] sm:$0xff]
    %v415 = vld [vmem:[%s411 + $0x18] sm:$0xff]
    %v416 = vld [vmem:[%s411 + $0x20] sm:$0xff]
    %v417 = vld [vmem:[%s411 + $0x28] sm:$0xff]
    %v418 = vld [vmem:[%s411 + $0x30] sm:$0xff]
    %v419 = vld [vmem:[%s411 + $0x38] sm:$0xff]
    %v420 = vmul.f32 %v403, %v412
    %v421 = vmul.f32 %v404, %v413
    %v422 = vmul.f32 %v405, %v414
    %v423 = vmul.f32 %v406, %v415
    %v424 = vmul.f32 %v407, %v416
    %v425 = vmul.f32 %v408, %v417
    %v426 = vmul.f32 %v409, %v418
    %v427 = vmul.f32 %v410, %v419
    %v428 = vadd.f32 %v394, %v420
    %v429 = vadd.f32 %v395, %v421
    %v430 = vadd.f32 %v396, %v422
    %v431 = vadd.f32 %v397, %v423
    %v432 = vadd.f32 %v398, %v424
    %v433 = vadd.f32 %v399, %v425
    %v434 = vadd.f32 %v400, %v426
    %v435 = vadd.f32 %v401, %v427
    %s436 = scalar_lea.vmem [#allocation2], 704
    %v437 = vld [vmem:[%s436] sm:$0xff]
    %v438 = vld [vmem:[%s436 + $0x8] sm:$0xff]
    %v439 = vld [vmem:[%s436 + $0x10] sm:$0xff]
    %v440 = vld [vmem:[%s436 + $0x18] sm:$0xff]
    %v441 = vld [vmem:[%s436 + $0x20] sm:$0xff]
    %v442 = vld [vmem:[%s436 + $0x28] sm:$0xff]
    %v443 = vld [vmem:[%s436 + $0x30] sm:$0xff]
    %v444 = vld [vmem:[%s436 + $0x38] sm:$0xff]
    %s445 = scalar_lea.vmem [#allocation5], 704
    %v446 = vld [vmem:[%s445] sm:$0xff]
    %v447 = vld [vmem:[%s445 + $0x8] sm:$0xff]
    %v448 = vld [vmem:[%s445 + $0x10] sm:$0xff]
    %v449 = vld [vmem:[%s445 + $0x18] sm:$0xff]
    %v450 = vld [vmem:[%s445 + $0x20] sm:$0xff]
    %v451 = vld [vmem:[%s445 + $0x28] sm:$0xff]
    %v452 = vld [vmem:[%s445 + $0x30] sm:$0xff]
    %v453 = vld [vmem:[%s445 + $0x38] sm:$0xff]
    %v454 = vmul.f32 %v437, %v446
    %v455 = vmul.f32 %v438, %v447
    %v456 = vmul.f32 %v439, %v448
    %v457 = vmul.f32 %v440, %v449
    %v458 = vmul.f32 %v441, %v450
    %v459 = vmul.f32 %v442, %v451
    %v460 = vmul.f32 %v443, %v452
    %v461 = vmul.f32 %v444, %v453
    %v462 = vadd.f32 %v428, %v454
    %v463 = vadd.f32 %v429, %v455
    %v464 = vadd.f32 %v430, %v456
    %v465 = vadd.f32 %v431, %v457
    %v466 = vadd.f32 %v432, %v458
    %v467 = vadd.f32 %v433, %v459
    %v468 = vadd.f32 %v434, %v460
    %v469 = vadd.f32 %v435, %v461
    %s470 = scalar_lea.vmem [#allocation2], 768
    %v471 = vld [vmem:[%s470] sm:$0xff]
    %v472 = vld [vmem:[%s470 + $0x8] sm:$0xff]
    %v473 = vld [vmem:[%s470 + $0x10] sm:$0xff]
    %v474 = vld [vmem:[%s470 + $0x18] sm:$0xff]
    %v475 = vld [vmem:[%s470 + $0x20] sm:$0xff]
    %v476 = vld [vmem:[%s470 + $0x28] sm:$0xff]
    %v477 = vld [vmem:[%s470 + $0x30] sm:$0xff]
    %v478 = vld [vmem:[%s470 + $0x38] sm:$0xff]
    %s479 = scalar_lea.vmem [#allocation5], 768
    %v480 = vld [vmem:[%s479] sm:$0xff]
    %v481 = vld [vmem:[%s479 + $0x8] sm:$0xff]
    %v482 = vld [vmem:[%s479 + $0x10] sm:$0xff]
    %v483 = vld [vmem:[%s479 + $0x18] sm:$0xff]
    %v484 = vld [vmem:[%s479 + $0x20] sm:$0xff]
    %v485 = vld [vmem:[%s479 + $0x28] sm:$0xff]
    %v486 = vld [vmem:[%s479 + $0x30] sm:$0xff]
    %v487 = vld [vmem:[%s479 + $0x38] sm:$0xff]
    %v488 = vmul.f32 %v471, %v480
    %v489 = vmul.f32 %v472, %v481
    %v490 = vmul.f32 %v473, %v482
    %v491 = vmul.f32 %v474, %v483
    %v492 = vmul.f32 %v475, %v484
    %v493 = vmul.f32 %v476, %v485
    %v494 = vmul.f32 %v477, %v486
    %v495 = vmul.f32 %v478, %v487
    %v496 = vadd.f32 %v462, %v488
    %v497 = vadd.f32 %v463, %v489
    %v498 = vadd.f32 %v464, %v490
    %v499 = vadd.f32 %v465, %v491
    %v500 = vadd.f32 %v466, %v492
    %v501 = vadd.f32 %v467, %v493
    %v502 = vadd.f32 %v468, %v494
    %v503 = vadd.f32 %v469, %v495
    %s504 = scalar_lea.vmem [#allocation2], 832
    %v505 = vld [vmem:[%s504] sm:$0xff]
    %v506 = vld [vmem:[%s504 + $0x8] sm:$0xff]
    %v507 = vld [vmem:[%s504 + $0x10] sm:$0xff]
    %v508 = vld [vmem:[%s504 + $0x18] sm:$0xff]
    %v509 = vld [vmem:[%s504 + $0x20] sm:$0xff]
    %v510 = vld [vmem:[%s504 + $0x28] sm:$0xff]
    %v511 = vld [vmem:[%s504 + $0x30] sm:$0xff]
    %v512 = vld [vmem:[%s504 + $0x38] sm:$0xff]
    %s513 = scalar_lea.vmem [#allocation5], 832
    %v514 = vld [vmem:[%s513] sm:$0xff]
    %v515 = vld [vmem:[%s513 + $0x8] sm:$0xff]
    %v516 = vld [vmem:[%s513 + $0x10] sm:$0xff]
    %v517 = vld [vmem:[%s513 + $0x18] sm:$0xff]
    %v518 = vld [vmem:[%s513 + $0x20] sm:$0xff]
    %v519 = vld [vmem:[%s513 + $0x28] sm:$0xff]
    %v520 = vld [vmem:[%s513 + $0x30] sm:$0xff]
    %v521 = vld [vmem:[%s513 + $0x38] sm:$0xff]
    %v522 = vmul.f32 %v505, %v514
    %v523 = vmul.f32 %v506, %v515
    %v524 = vmul.f32 %v507, %v516
    %v525 = vmul.f32 %v508, %v517
    %v526 = vmul.f32 %v509, %v518
    %v527 = vmul.f32 %v510, %v519
    %v528 = vmul.f32 %v511, %v520
    %v529 = vmul.f32 %v512, %v521
    %v530 = vadd.f32 %v496, %v522
    %v531 = vadd.f32 %v497, %v523
    %v532 = vadd.f32 %v498, %v524
    %v533 = vadd.f32 %v499, %v525
    %v534 = vadd.f32 %v500, %v526
    %v535 = vadd.f32 %v501, %v527
    %v536 = vadd.f32 %v502, %v528
    %v537 = vadd.f32 %v503, %v529
    %s538 = scalar_lea.vmem [#allocation2], 896
    %v539 = vld [vmem:[%s538] sm:$0xff]
    %v540 = vld [vmem:[%s538 + $0x8] sm:$0xff]
    %v541 = vld [vmem:[%s538 + $0x10] sm:$0xff]
    %v542 = vld [vmem:[%s538 + $0x18] sm:$0xff]
    %v543 = vld [vmem:[%s538 + $0x20] sm:$0xff]
    %v544 = vld [vmem:[%s538 + $0x28] sm:$0xff]
    %v545 = vld [vmem:[%s538 + $0x30] sm:$0xff]
    %v546 = vld [vmem:[%s538 + $0x38] sm:$0xff]
    %s547 = scalar_lea.vmem [#allocation5], 896
    %v548 = vld [vmem:[%s547] sm:$0xff]
    %v549 = vld [vmem:[%s547 + $0x8] sm:$0xff]
    %v550 = vld [vmem:[%s547 + $0x10] sm:$0xff]
    %v551 = vld [vmem:[%s547 + $0x18] sm:$0xff]
    %v552 = vld [vmem:[%s547 + $0x20] sm:$0xff]
    %v553 = vld [vmem:[%s547 + $0x28] sm:$0xff]
    %v554 = vld [vmem:[%s547 + $0x30] sm:$0xff]
    %v555 = vld [vmem:[%s547 + $0x38] sm:$0xff]
    %v556 = vmul.f32 %v539, %v548
    %v557 = vmul.f32 %v540, %v549
    %v558 = vmul.f32 %v541, %v550
    %v559 = vmul.f32 %v542, %v551
    %v560 = vmul.f32 %v543, %v552
    %v561 = vmul.f32 %v544, %v553
    %v562 = vmul.f32 %v545, %v554
    %v563 = vmul.f32 %v546, %v555
    %v564 = vadd.f32 %v530, %v556
    %v565 = vadd.f32 %v531, %v557
    %v566 = vadd.f32 %v532, %v558
    %v567 = vadd.f32 %v533, %v559
    %v568 = vadd.f32 %v534, %v560
    %v569 = vadd.f32 %v535, %v561
    %v570 = vadd.f32 %v536, %v562
    %v571 = vadd.f32 %v537, %v563
    %s572 = scalar_lea.vmem [#allocation2], 960
    %v573 = vld [vmem:[%s572] sm:$0xff]
    %v574 = vld [vmem:[%s572 + $0x8] sm:$0xff]
    %v575 = vld [vmem:[%s572 + $0x10] sm:$0xff]
    %v576 = vld [vmem:[%s572 + $0x18] sm:$0xff]
    %v577 = vld [vmem:[%s572 + $0x20] sm:$0xff]
    %v578 = vld [vmem:[%s572 + $0x28] sm:$0xff]
    %v579 = vld [vmem:[%s572 + $0x30] sm:$0xff]
    %v580 = vld [vmem:[%s572 + $0x38] sm:$0xff]
    %s581 = scalar_lea.vmem [#allocation5], 960
    %v582 = vld [vmem:[%s581] sm:$0xff]
    %v583 = vld [vmem:[%s581 + $0x8] sm:$0xff]
    %v584 = vld [vmem:[%s581 + $0x10] sm:$0xff]
    %v585 = vld [vmem:[%s581 + $0x18] sm:$0xff]
    %v586 = vld [vmem:[%s581 + $0x20] sm:$0xff]
    %v587 = vld [vmem:[%s581 + $0x28] sm:$0xff]
    %v588 = vld [vmem:[%s581 + $0x30] sm:$0xff]
    %v589 = vld [vmem:[%s581 + $0x38] sm:$0xff]
    %v590 = vmul.f32 %v573, %v582
    %v591 = vmul.f32 %v574, %v583
    %v592 = vmul.f32 %v575, %v584
    %v593 = vmul.f32 %v576, %v585
    %v594 = vmul.f32 %v577, %v586
    %v595 = vmul.f32 %v578, %v587
    %v596 = vmul.f32 %v579, %v588
    %v597 = vmul.f32 %v580, %v589
    %v598 = vadd.f32 %v564, %v590
    %v599 = vadd.f32 %v565, %v591
    %v600 = vadd.f32 %v566, %v592
    %v601 = vadd.f32 %v567, %v593
    %v602 = vadd.f32 %v568, %v594
    %v603 = vadd.f32 %v569, %v595
    %v604 = vadd.f32 %v570, %v596
    %v605 = vadd.f32 %v571, %v597
    %606 = vst [vmem:[#allocation8] sm:$0xff] %v598
    %607 = vst [vmem:[#allocation8 + $0x8] sm:$0xff] %v599
    %608 = vst [vmem:[#allocation8 + $0x10] sm:$0xff] %v600
    %609 = vst [vmem:[#allocation8 + $0x18] sm:$0xff] %v601
    %610 = vst [vmem:[#allocation8 + $0x20] sm:$0xff] %v602
    %611 = vst [vmem:[#allocation8 + $0x28] sm:$0xff] %v603
    %612 = vst [vmem:[#allocation8 + $0x30] sm:$0xff] %v604
    %613 = vst [vmem:[#allocation8 + $0x38] sm:$0xff] %v605
    // Predicated region
    $region26: #{tpu_custom_call.1} parent=1 // pred_check
      _
    $region27: #{tpu_custom_call.1} parent=1 // pred_check_branch
      %615 = sbr.rel (0) target = $region29
    $region28: #{tpu_custom_call.1} parent=1 // pred_region
      %s617 = ssub.s32 1024, 1024
      %618 = vsyncadd [#allocation4], %s617
      %s619 = sshll.u32 [#allocation8], 4
      %s620 = int_to_ptr.vmem [resolvable:$true] %s619
      %625 = dma.vmem_to_hbm [thread:$0]  %s620, 1024, %s3, [#allocation4], 512, 512, 32
    $region29: #{tpu_custom_call.1} parent=1 // pred_fallthru
      _
    // Predicated region
    $region30: #{tpu_custom_call.1} parent=1 // pred_check
      _
    $region31: #{tpu_custom_call.1} parent=1 // pred_check_branch
      %627 = sbr.rel (0) target = $region33
    $region32: #{tpu_custom_call.1} parent=1 // pred_region
      %628 = dma.done [#allocation4], 1024
    $region33: #{tpu_custom_call.1} parent=1 // pred_fallthru
      _
    %629 = vsyncpa [#allocation3], 1
    %630 = vsyncpa [#allocation6], 1
    %631 = vsyncpa [#allocation4], 1

</llo_original>
